<compile_context>
chip_gen: v5e
topology: v5e:2x2
jax: 0.10.0
libtpu: 0.0.40
codegen_flags: <defaults>
</compile_context>

<pallas_src>
import math
import functools

import jax
import jax.numpy as jnp
from jax import lax
from jax.experimental import pallas as pl
from jax.experimental.pallas import tpu as pltpu


def _ada_ins_norm_kernel(mod_ref, x_ref, o_ref, *, eps, seq_len):
    # mod_ref: (2, tD)  row 0 = scale, row 1 = shift (f32)
    # x_ref, o_ref: (S, tD)  one channel-tile of one batch element
    inv_s = 1.0 / float(seq_len)

    # Pass 1: mean (f32 accumulation).
    mean = jnp.sum(x_ref[...].astype(jnp.float32), axis=0, keepdims=True) * inv_s

    # Pass 2: two-pass (numerically safe) biased variance; re-read x_ref so no
    # full f32 copy has to stay live across passes.
    d = x_ref[...].astype(jnp.float32) - mean
    var = jnp.sum(d * d, axis=0, keepdims=True) * inv_s

    mod = mod_ref[...].astype(jnp.float32)           # (2, tD)
    scale = mod[0:1, :]
    shift = mod[1:2, :]

    # Fused normalize + modulate:
    #   out = (x - mean) * rsqrt(var+eps) * (1+scale) + shift = x * a + c
    a = lax.rsqrt(var + eps) * (1.0 + scale)         # rsqrt -> EUP
    c = shift - mean * a

    # Pass 3: re-read x_ref for the store.  bf16 I/O -> do the FMA in bf16
    # (stats above are already f32); otherwise compute in f32.
    if o_ref.dtype == jnp.bfloat16 and x_ref.dtype == jnp.bfloat16:
        o_ref[...] = x_ref[...] * a.astype(jnp.bfloat16) + c.astype(jnp.bfloat16)
    else:
        o_ref[...] = (x_ref[...].astype(jnp.float32) * a + c).astype(o_ref.dtype)


def sinusoidal_pos_emb(t, num_steps, dim, rescale_steps=4000.0):
    # Plain-JAX glue matching SinusoidalPosEmb.forward.
    t = t.astype(jnp.float32) / float(num_steps) * float(rescale_steps)
    half_dim = dim // 2
    emb = math.log(10000.0) / (half_dim - 1)
    emb = jnp.exp(jnp.arange(half_dim, dtype=jnp.float32) * -emb)
    emb = t[:, None] * emb[None, :]
    return jnp.concatenate([jnp.sin(emb), jnp.cos(emb)], axis=-1)  # (B, dim)


def _pick_d_tile(D, S, itemsize, max_block_bytes, min_grid=1):
    """Channel-tile selection.

    Prefers tD = D (fully contiguous rows) whenever the (S, D) slab fits the
    block budget and no minimum grid size is requested.  Otherwise picks the
    largest 128-multiple divisor of D that fits the budget, keeps rows >= ~1 KiB
    (contiguous-DMA friendly), and yields at least `min_grid` channel tiles.
    Falls back to the full D when D is not a multiple of 128 (full-dim blocks
    are always legal)."""
    full_bytes = S * D * itemsize
    if full_bytes <= max_block_bytes and min_grid <= 1:
        return D
    if D % 128 != 0:
        return D
    min_chunk = max(128, -(-1024 // itemsize))       # >= ~1 KiB per row
    cands = [t for t in range(128, D + 1, 128) if D % t == 0]
    good = [t for t in cands
            if S * t * itemsize <= max_block_bytes
            and t >= min_chunk and D // t >= min_grid]
    if good:
        return max(good)
    fitting = [t for t in cands
               if S * t * itemsize <= max_block_bytes and D // t >= min_grid]
    if fitting:
        return max(fitting)
    return min(cands)


def ada_ins_norm(x, timestep, w, b, *, num_steps, eps=1e-5,
                 max_block_bytes=2 * 1024 * 1024):
    """AdaInsNorm forward.

    x:        (B, S, D)  activations (f32 or bf16)
    timestep: (B,)       diffusion timesteps
    w:        (D, 2D)    transposed nn.Linear weight (forward is emb @ w + b)
    b:        (2D,)      nn.Linear bias
    """
    B, S, D = x.shape
    itemsize = jnp.dtype(x.dtype).itemsize

    # --- tiny projection, hoisted out of the kernel: one (B,D)@(D,2D) matmul ---
    emb = sinusoidal_pos_emb(timestep, num_steps, D)            # (B, D)
    h = emb * jax.nn.sigmoid(emb)                               # SiLU
    proj = h @ w.astype(jnp.float32) + b.astype(jnp.float32)[None, :]  # (B, 2D)
    # Pack scale/shift as one (B, 2, D) f32 array -> a single tiny DMA per step.
    mod = jnp.stack([proj[:, :D], proj[:, D:]], axis=1)         # (B, 2, D)

    # --- channel tiling (>=2 channel tiles when B==1 so both v7x TCs work) ---
    min_nd = 2 if B == 1 else 1
    tD = _pick_d_tile(D, S, itemsize, max_block_bytes, min_grid=min_nd)
    n_d = D // tD

    # VMEM budget (honest accounting): double-buffered x in + out blocks,
    # double-buffered tiny mod blocks, plus ~2 in-kernel f32 temporaries of
    # the x tile (cast copy / (x - mean) diff).
    x_blk = S * tD * itemsize
    needed = 2 * 2 * x_blk + 2 * (2 * tD * 4) + 2 * (S * tD * 4)

    vmem_limit = None
    if needed > 16 * 1024 * 1024:            # default scoped limit on v5e
        try:
            phys = pltpu.get_tpu_info().vmem_capacity_bytes
        except Exception:
            phys = 64 * 1024 * 1024          # assume the most constrained (v7x)
        cap = (phys * 5) // 8                # ~40 MiB on 64 MiB parts
        if needed > cap:
            # TODO(synk): add an in-kernel S-chunked stats path for huge S*tD.
            raise ValueError(
                f"AdaInsNorm tile ({S}, {tD}) needs ~{needed >> 20} MiB VMEM, "
                f"over the safe cap {cap >> 20} MiB; lower max_block_bytes.")
        vmem_limit = min(needed + (4 << 20), cap)

    kernel = functools.partial(_ada_ins_norm_kernel, eps=eps, seq_len=S)
    cost = pl.CostEstimate(
        flops=8 * B * S * D,
        transcendentals=B * D,
        bytes_accessed=2 * B * S * D * itemsize + 2 * B * D * 4,
    )

    return pl.pallas_call(
        kernel,
        out_shape=jax.ShapeDtypeStruct((B, S, D), x.dtype),
        grid_spec=pltpu.PrefetchScalarGridSpec(
            num_scalar_prefetch=0,
            grid=(B, n_d),
            in_specs=[
                pl.BlockSpec((pl.Squeezed(), 2, tD),
                             lambda bi, di: (bi, 0, di)),        # packed scale/shift
                pl.BlockSpec((pl.Squeezed(), S, tD),
                             lambda bi, di: (bi, 0, di)),        # x
            ],
            out_specs=pl.BlockSpec((pl.Squeezed(), S, tD),
                                   lambda bi, di: (bi, 0, di)),
        ),
        compiler_params=pltpu.CompilerParams(
            dimension_semantics=("parallel", "parallel"),
            vmem_limit_bytes=vmem_limit),
        cost_estimate=cost,
    )(mod, x)


def _reference(x, timestep, w, b, *, num_steps, eps=1e-5):
    # Pure-JAX reference mirroring the PyTorch forward.
    B, S, D = x.shape
    emb = sinusoidal_pos_emb(timestep, num_steps, D)
    h = emb * jax.nn.sigmoid(emb)
    proj = h @ w.astype(jnp.float32) + b.astype(jnp.float32)    # (B, 2D)
    scale, shift = proj[:, :D], proj[:, D:]
    xf = x.astype(jnp.float32)
    xt = jnp.transpose(xf, (0, 2, 1))                           # (B, D, S)
    mean = jnp.mean(xt, axis=-1, keepdims=True)
    var = jnp.mean((xt - mean) ** 2, axis=-1, keepdims=True)
    xn = (xt - mean) / jnp.sqrt(var + eps)
    xn = jnp.transpose(xn, (0, 2, 1))                           # (B, S, D)
    return xn * (1.0 + scale[:, None, :]) + shift[:, None, :]


if __name__ == "__main__":
    max_timestep = 1000
    key = jax.random.PRNGKey(0)
    kx, kt, kw, kb, kx2, kx3 = jax.random.split(key, 6)

    # --- small main config (D not a multiple of 128 -> single full-D block) ---
    B, S, D = 2, 8, 32
    x = jax.random.normal(kx, (B, S, D), dtype=jnp.float32)
    timestep = jax.random.randint(kt, (B,), 0, max_timestep).astype(jnp.float32)

    # nn.Linear(D, 2D): weight is (2D, D); forward is emb @ W^T + b.
    # We store W^T directly as (D, 2D).
    bound = 1.0 / math.sqrt(D)
    w = jax.random.uniform(kw, (D, 2 * D), minval=-bound, maxval=bound,
                           dtype=jnp.float32)
    b = jax.random.uniform(kb, (2 * D,), minval=-bound, maxval=bound,
                           dtype=jnp.float32)

    out = ada_ins_norm(x, timestep, w, b, num_steps=max_timestep)
    out = jax.block_until_ready(out)
    ref = _reference(x, timestep, w, b, num_steps=max_timestep)
    assert out.shape == (B, S, D)
    assert jnp.allclose(out, ref, atol=1e-4, rtol=1e-4), "mismatch vs reference"

    # --- exercise the channel-tiled path (tiny budget forces tD=128, grid=(2,2)) ---
    B2, S2, D2 = 2, 16, 256
    x2 = jax.random.normal(kx2, (B2, S2, D2), dtype=jnp.float32)
    t2 = jax.random.randint(kt, (B2,), 0, max_timestep).astype(jnp.float32)
    bound2 = 1.0 / math.sqrt(D2)
    w2 = jax.random.uniform(kw, (D2, 2 * D2), minval=-bound2, maxval=bound2,
                            dtype=jnp.float32)
    b2 = jax.random.uniform(kb, (2 * D2,), minval=-bound2, maxval=bound2,
                            dtype=jnp.float32)
    out2 = ada_ins_norm(x2, t2, w2, b2, num_steps=max_timestep,
                        max_block_bytes=S2 * 128 * 4)
    out2 = jax.block_until_ready(out2)
    ref2 = _reference(x2, t2, w2, b2, num_steps=max_timestep)
    assert jnp.allclose(out2, ref2, atol=1e-4, rtol=1e-4), "tiled mismatch"

    # --- bf16 I/O path (stats in f32, final FMA in bf16, full-D block) ---
    xb = x2.astype(jnp.bfloat16)
    out3 = ada_ins_norm(xb, t2, w2, b2, num_steps=max_timestep)
    out3 = jax.block_until_ready(out3)
    ref3 = _reference(xb, t2, w2, b2, num_steps=max_timestep)
    assert out3.dtype == jnp.bfloat16
    assert jnp.allclose(out3.astype(jnp.float32), ref3, atol=5e-2, rtol=5e-2), \
        "bf16 mismatch"

    # --- B=1 path: channel axis forcibly split so a 2-TC chip has >=2 steps ---
    B3, S3, D3 = 1, 8, 256
    x3 = jax.random.normal(kx3, (B3, S3, D3), dtype=jnp.float32)
    t3 = jax.random.randint(kt, (B3,), 0, max_timestep).astype(jnp.float32)
    out4 = ada_ins_norm(x3, t3, w2, b2, num_steps=max_timestep)
    out4 = jax.block_until_ready(out4)
    ref4 = _reference(x3, t3, w2, b2, num_steps=max_timestep)
    assert jnp.allclose(out4, ref4, atol=1e-4, rtol=1e-4), "B=1 split mismatch"

    print("KERNEL_OK")
</pallas_src>

<mosaic_0001>
module attributes {stable_mosaic.version = 11 : i64} {
  func.func @_ada_ins_norm_kernel(%arg0: i32, %arg1: i32, %arg2: memref<1x2x32xf32, #tpu.memory_space<vmem>>, %arg3: memref<1x8x32xf32, #tpu.memory_space<vmem>>, %arg4: memref<1x8x32xf32, #tpu.memory_space<vmem>>) attributes {dimension_semantics = [#tpu.dimension_semantics<parallel>, #tpu.dimension_semantics<parallel>], iteration_bounds = array<i64: 2, 1>, scalar_prefetch = 0 : i64, scratch_operands = 0 : i64, tpu.core_type = #tpu.core_type<tc>, window_params = [{transform_indices = @transform_0, window_bounds = array<i64: 1, 2, 32>}, {transform_indices = @transform_1, window_bounds = array<i64: 1, 8, 32>}, {transform_indices = @transform_2, window_bounds = array<i64: 1, 8, 32>}]} {
    %c0 = arith.constant 0 : index
    %c0_0 = arith.constant 0 : index
    %c0_1 = arith.constant 0 : index
    %0 = vector.load %arg3[%c0, %c0_0, %c0_1] : memref<1x8x32xf32, #tpu.memory_space<vmem>>, vector<1x8x32xf32>
    %1 = vector.shape_cast %0 : vector<1x8x32xf32> to vector<8x32xf32>
    %cst = arith.constant dense<0.000000e+00> : vector<32xf32>
    %2 = vector.multi_reduction <add>, %1, %cst [0] : vector<8x32xf32> to vector<32xf32>
    %3 = vector.shape_cast %2 : vector<32xf32> to vector<1x32xf32>
    %cst_2 = arith.constant 1.250000e-01 : f32
    %4 = vector.broadcast %cst_2 : f32 to vector<1x32xf32>
    %5 = arith.mulf %3, %4 : vector<1x32xf32>
    %c0_3 = arith.constant 0 : index
    %c0_4 = arith.constant 0 : index
    %c0_5 = arith.constant 0 : index
    %6 = vector.load %arg3[%c0_3, %c0_4, %c0_5] : memref<1x8x32xf32, #tpu.memory_space<vmem>>, vector<1x8x32xf32>
    %7 = vector.shape_cast %6 : vector<1x8x32xf32> to vector<8x32xf32>
    %8 = vector.broadcast %5 : vector<1x32xf32> to vector<8x32xf32>
    %9 = arith.subf %7, %8 : vector<8x32xf32>
    %10 = arith.mulf %9, %9 : vector<8x32xf32>
    %cst_6 = arith.constant dense<0.000000e+00> : vector<32xf32>
    %11 = vector.multi_reduction <add>, %10, %cst_6 [0] : vector<8x32xf32> to vector<32xf32>
    %12 = vector.shape_cast %11 : vector<32xf32> to vector<1x32xf32>
    %cst_7 = arith.constant 1.250000e-01 : f32
    %13 = vector.broadcast %cst_7 : f32 to vector<1x32xf32>
    %14 = arith.mulf %12, %13 : vector<1x32xf32>
    %c0_8 = arith.constant 0 : index
    %c0_9 = arith.constant 0 : index
    %c0_10 = arith.constant 0 : index
    %15 = vector.load %arg2[%c0_8, %c0_9, %c0_10] : memref<1x2x32xf32, #tpu.memory_space<vmem>>, vector<1x2x32xf32>
    %16 = vector.shape_cast %15 : vector<1x2x32xf32> to vector<2x32xf32>
    %17 = vector.extract_strided_slice %16 {offsets = [0, 0], sizes = [1, 32], strides = [1, 1]} : vector<2x32xf32> to vector<1x32xf32>
    %18 = vector.extract_strided_slice %16 {offsets = [1, 0], sizes = [1, 32], strides = [1, 1]} : vector<2x32xf32> to vector<1x32xf32>
    %cst_11 = arith.constant 9.99999974E-6 : f32
    %19 = vector.broadcast %cst_11 : f32 to vector<1x32xf32>
    %20 = arith.addf %14, %19 : vector<1x32xf32>
    %21 = math.rsqrt %20 : vector<1x32xf32>
    %cst_12 = arith.constant 1.000000e+00 : f32
    %22 = vector.broadcast %cst_12 : f32 to vector<1x32xf32>
    %23 = arith.addf %22, %17 : vector<1x32xf32>
    %24 = arith.mulf %21, %23 : vector<1x32xf32>
    %25 = arith.mulf %5, %24 : vector<1x32xf32>
    %26 = arith.subf %18, %25 : vector<1x32xf32>
    %c0_13 = arith.constant 0 : index
    %c0_14 = arith.constant 0 : index
    %c0_15 = arith.constant 0 : index
    %27 = vector.load %arg3[%c0_13, %c0_14, %c0_15] : memref<1x8x32xf32, #tpu.memory_space<vmem>>, vector<1x8x32xf32>
    %28 = vector.shape_cast %27 : vector<1x8x32xf32> to vector<8x32xf32>
    %29 = vector.broadcast %24 : vector<1x32xf32> to vector<8x32xf32>
    %30 = arith.mulf %28, %29 : vector<8x32xf32>
    %31 = vector.broadcast %26 : vector<1x32xf32> to vector<8x32xf32>
    %32 = arith.addf %30, %31 : vector<8x32xf32>
    %c0_16 = arith.constant 0 : index
    %c0_17 = arith.constant 0 : index
    %c0_18 = arith.constant 0 : index
    %33 = vector.load %arg4[%c0_16, %c0_17, %c0_18] : memref<1x8x32xf32, #tpu.memory_space<vmem>>, vector<1x8x32xf32>
    %34 = vector.shape_cast %33 : vector<1x8x32xf32> to vector<8x32xf32>
    %35 = vector.shape_cast %32 : vector<8x32xf32> to vector<1x8x32xf32>
    tpu.vector_store %arg4[%c0_16, %c0_17, %c0_18], %35 {strides = array<i32>} : memref<1x8x32xf32, #tpu.memory_space<vmem>>, vector<1x8x32xf32>,
    return
  }
  func.func @transform_0(%arg0: i32, %arg1: i32) -> (i32, i32, i32) {
    %c0_i32 = arith.constant 0 : i32
    %c0_i32_0 = arith.constant 0 : i32
    return %arg0, %c0_i32, %arg1 : i32, i32, i32
  }
  func.func @transform_1(%arg0: i32, %arg1: i32) -> (i32, i32, i32) {
    %c0_i32 = arith.constant 0 : i32
    %c0_i32_0 = arith.constant 0 : i32
    return %arg0, %c0_i32, %arg1 : i32, i32, i32
  }
  func.func @transform_2(%arg0: i32, %arg1: i32) -> (i32, i32, i32) {
    %c0_i32 = arith.constant 0 : i32
    %c0_i32_0 = arith.constant 0 : i32
    return %arg0, %c0_i32, %arg1 : i32, i32, i32
  }
}

</mosaic_0001>

<llo_original>
// kernel: tpu_custom_call.1
$region0: #{tpu_custom_call.1}
  #allocation0 [shape = 'u32[]', space=smem, size = 0x4, offset = 0x4, fixed_abs, tag = 'smem constant byte address 0x4 - core index']
  #allocation1 [shape = 'u32[72,128]{1,0:T(1,128)}', space=vmem, size = 0x9000, scoped, tag = 'internal scratch']
  %s0 = inlined_call_operand.hbm [shape: f32[2,2,32], index: 0, kind: input, shape index: {}]
  %s1 = inlined_call_operand.hbm [shape: f32[2,8,32], index: 1, kind: input, shape index: {}]
  %s2 = inlined_call_operand.hbm [shape: f32[2,8,32], index: 2, kind: output, shape index: {}]
  %s3 = sld [smem:[#allocation0]]
  $region49: #{tpu_custom_call.1} parent=0
    _
  %s5 = ssub.s32 1, %s3
  %s6 = scalar_select 0, %s5, %s3
  $region1: #{tpu_custom_call.1} parent=0
    #allocation2 [shape = 'u8[2048]{0}', space=vmem, size = 0x800, scoped, tag = 'input window, operand 0']
    #allocation3 [shape = 's32[2]{0}', space=sflag, size = 0x8, scoped, tag = 'scoped memory for tpu_custom_call.1']
    #allocation4 [shape = 's32[2]{0}', space=sflag, size = 0x8, scoped, tag = 'scoped memory for tpu_custom_call.1']
    #allocation5 [shape = 'u8[8192]{0}', space=vmem, size = 0x2000, scoped, tag = 'input window, operand 1']
    #allocation6 [shape = 's32[2]{0}', space=sflag, size = 0x8, scoped, tag = 'scoped memory for tpu_custom_call.1']
    #allocation7 [shape = 'u8[8192]{0}', space=vmem, size = 0x2000, scoped, tag = 'output window, operand 0']
    %7 = vsyncpa [#allocation3], 0
    %s8 = scalar_lea.sflag [#allocation3], 1
    %9 = vsyncpa %s8, 0
    %10 = vsyncpa [#allocation6], 0
    %s11 = scalar_lea.sflag [#allocation6], 1
    %12 = vsyncpa %s11, 0
    %13 = vsyncpa [#allocation4], 0
    %s14 = scalar_lea.sflag [#allocation4], 1
    %15 = vsyncpa %s14, 0
    loop: start=0, step=1, limit=4
    $region2: #{tpu_custom_call.1} parent=1 // loop_pre_header
      _
    $region3: #{tpu_custom_call.1} parent=1 // loop_header
      %s17 = sphi 0, %s21
      %p18 = scmp.ge.s32.totalorder %s17, 4
      %s24 = sphi 0, %s36
      %s25 = sphi 0, %s32
      %s26 = sphi 0, %s24
      %s27 = sphi 0, %s25
      %s28 = sphi 0, %s26
      %s29 = sphi 0, %s27
      %s41 = sphi 0, %s43
      %s44 = sphi 0, %s41
      %s45 = sphi 0, %s44
      %s61 = sphi 0, %s45
      %s69 = sphi 0, %s71
      %s72 = sphi 0, %s69
      %s73 = sphi 0, %s72
      %s89 = sphi 0, %s73
      %s97 = sphi 0, %s99
      %s100 = sphi 0, %s97
      %s101 = sphi 0, %s100
      %s117 = sphi 0, %s101
    $region4: #{tpu_custom_call.1} parent=1 // loop_header_branch
      %20 = sbr.rel (%p18) target = $region8
    $region5: #{tpu_custom_call.1} parent=1 // loop_body
      %s22 = ssub.s32 %s17, 1
      %s23 = ssub.s32 %s17, 2
      %s30 = sadd.s32 1, %s25
      %p31 = scmp.ge.s32.totalorder %s30, 1
      %s32 = scalar_select %p31, 0, %s30
      %s33 = sadd.s32 1, %s24
      %s34 = scalar_select %p31, %s33, %s24
      %p35 = scmp.ge.s32.totalorder %s34, 2
      %s36 = scalar_select %p35, 0, %s34
      %s37 = ssub.s32 %s24, %s36
      %s38 = ssub.s32 %s25, %s32
      %s39 = sor.u32 %s37, %s38
      %p40 = scmp.eq.s32.totalorder %s39, 0
      %s42 = sadd.s32 %s41, 1
      %s43 = scalar_select %p40, %s41, %s42
      %p46 = pneg %p40
      %p47 = scmp.eq.s32.totalorder %s17, 1
      %p48 = por %p46, %p47
      %p49 = scmp.ne.s32.totalorder %s41, %s44
      %p50 = scmp.eq.s32.totalorder %s17, 0
      %p51 = por %p49, %p50
      %p52 = scmp.ne.s32.totalorder %s41, %s44
      %p53 = scmp.eq.s32.totalorder %s22, 1
      %p54 = por %p52, %p53
      %p55 = scmp.ne.s32.totalorder %s44, %s45
      %p56 = scmp.eq.s32.totalorder %s22, 0
      %p57 = por %p55, %p56
      %p58 = scmp.ne.s32.totalorder %s44, %s45
      %p59 = scmp.eq.s32.totalorder %s23, 1
      %p60 = por %p58, %p59
      %p62 = scmp.ne.s32.totalorder %s45, %s61
      %p63 = scmp.eq.s32.totalorder %s23, 0
      %p64 = por %p62, %p63
      %s65 = ssub.s32 %s24, %s36
      %s66 = ssub.s32 %s25, %s32
      %s67 = sor.u32 %s65, %s66
      %p68 = scmp.eq.s32.totalorder %s67, 0
      %s70 = sadd.s32 %s69, 1
      %s71 = scalar_select %p68, %s69, %s70
      %p74 = pneg %p68
      %p75 = scmp.eq.s32.totalorder %s17, 1
      %p76 = por %p74, %p75
      %p77 = scmp.ne.s32.totalorder %s69, %s72
      %p78 = scmp.eq.s32.totalorder %s17, 0
      %p79 = por %p77, %p78
      %p80 = scmp.ne.s32.totalorder %s69, %s72
      %p81 = scmp.eq.s32.totalorder %s22, 1
      %p82 = por %p80, %p81
      %p83 = scmp.ne.s32.totalorder %s72, %s73
      %p84 = scmp.eq.s32.totalorder %s22, 0
      %p85 = por %p83, %p84
      %p86 = scmp.ne.s32.totalorder %s72, %s73
      %p87 = scmp.eq.s32.totalorder %s23, 1
      %p88 = por %p86, %p87
      %p90 = scmp.ne.s32.totalorder %s73, %s89
      %p91 = scmp.eq.s32.totalorder %s23, 0
      %p92 = por %p90, %p91
      %s93 = ssub.s32 %s24, %s36
      %s94 = ssub.s32 %s25, %s32
      %s95 = sor.u32 %s93, %s94
      %p96 = scmp.eq.s32.totalorder %s95, 0
      %s98 = sadd.s32 %s97, 1
      %s99 = scalar_select %p96, %s97, %s98
      %p102 = pneg %p96
      %p103 = scmp.eq.s32.totalorder %s17, 1
      %p104 = por %p102, %p103
      %p105 = scmp.ne.s32.totalorder %s97, %s100
      %p106 = scmp.eq.s32.totalorder %s17, 0
      %p107 = por %p105, %p106
      %p108 = scmp.ne.s32.totalorder %s97, %s100
      %p109 = scmp.eq.s32.totalorder %s22, 1
      %p110 = por %p108, %p109
      %p111 = scmp.ne.s32.totalorder %s100, %s101
      %p112 = scmp.eq.s32.totalorder %s22, 0
      %p113 = por %p111, %p112
      %p114 = scmp.ne.s32.totalorder %s100, %s101
      %p115 = scmp.eq.s32.totalorder %s23, 1
      %p116 = por %p114, %p115
      %p118 = scmp.ne.s32.totalorder %s101, %s117
      %p119 = scmp.eq.s32.totalorder %s23, 0
      %p120 = por %p118, %p119
      %p121 = scmp.le.s32.totalorder 1, %s17
      %p122 = scmp.lt.s32.totalorder %s17, 3
      %p123 = pnand %p121, %p122
      %p124 = pneg %p123
      // Predicated region
      $region9: #{tpu_custom_call.1} parent=5 // pred_check
        _
      $region10: #{tpu_custom_call.1} parent=5 // pred_check_branch
        %126 = sbr.rel (%p123) target = $region12
      $region11: #{tpu_custom_call.1} parent=5 // pred_region
        %s127 = ssub.s32 %s17, 1
      $region12: #{tpu_custom_call.1} parent=5 // pred_fallthru
        _
      %p128 = scmp.lt.s32.totalorder %s17, 2
      // Predicated region
      $region13: #{tpu_custom_call.1} parent=5 // pred_check
        %p129 = pneg %p128
      $region14: #{tpu_custom_call.1} parent=5 // pred_check_branch
        %131 = sbr.rel (%p129) target = $region16
      $region15: #{tpu_custom_call.1} parent=5 // pred_region
        // Predicated region
        $region17: #{tpu_custom_call.1} parent=15 // pred_check
          %p132 = pneg %p51
        $region18: #{tpu_custom_call.1} parent=15 // pred_check_branch
          %134 = sbr.rel (%p132) target = $region20
        $region19: #{tpu_custom_call.1} parent=15 // pred_region
          %s135 = sand.u32 %s41, 1
          %s136 = scalar_lea.sflag [#allocation3], %s135
          %s137 = sand.u32 %s41, 1
          %s138 = smul.addr %s137, 2
          %s139 = scalar_lea.vmem [#allocation2], %s138
          %141 = vsyncadd %s136, 0
          %s142 = sadd.s32 %s25, %s24
          %s143 = smul.addr %s142, 2
          %s144 = scalar_lea.hbm %s0, %s143
          %s146 = sshll.u32 %s144, 4
          %s147 = int_to_ptr.hbm [resolvable:$true] %s146
          %s148 = sshll.u32 %s139, 4
          %s149 = int_to_ptr.vmem [resolvable:$true] %s148
          %151 = dma.hbm_to_vmem [thread:$0]  %s147, 32, %s149, %s136
        $region20: #{tpu_custom_call.1} parent=15 // pred_fallthru
          _
        // Predicated region
        $region21: #{tpu_custom_call.1} parent=15 // pred_check
          %p152 = pneg %p79
        $region22: #{tpu_custom_call.1} parent=15 // pred_check_branch
          %154 = sbr.rel (%p152) target = $region24
        $region23: #{tpu_custom_call.1} parent=15 // pred_region
          %s155 = sand.u32 %s69, 1
          %s156 = scalar_lea.sflag [#allocation6], %s155
          %s157 = sand.u32 %s69, 1
          %s158 = smul.addr %s157, 8
          %s159 = scalar_lea.vmem [#allocation5], %s158
          %161 = vsyncadd %s156, 0
          %s162 = sadd.s32 %s25, %s24
          %s163 = smul.addr %s162, 8
          %s164 = scalar_lea.hbm %s1, %s163
          %s166 = sshll.u32 %s164, 4
          %s167 = int_to_ptr.hbm [resolvable:$true] %s166
          %s168 = sshll.u32 %s159, 4
          %s169 = int_to_ptr.vmem [resolvable:$true] %s168
          %171 = dma.hbm_to_vmem [thread:$0]  %s167, 128, %s169, %s156
        $region24: #{tpu_custom_call.1} parent=15 // pred_fallthru
          _
      $region16: #{tpu_custom_call.1} parent=5 // pred_fallthru
        _
      %p172 = scmp.le.s32.totalorder 1, %s17
      %p173 = scmp.lt.s32.totalorder %s17, 3
      %p174 = pnand %p172, %p173
      %p175 = pneg %p174
      // Predicated region
      $region25: #{tpu_custom_call.1} parent=5 // pred_check
        _
      $region26: #{tpu_custom_call.1} parent=5 // pred_check_branch
        %177 = sbr.rel (%p174) target = $region28
      $region27: #{tpu_custom_call.1} parent=5 // pred_region
        %s178 = ssub.s32 %s17, 1
        %s179 = sand.u32 %s44, 1
        %s180 = scalar_lea.sflag [#allocation3], %s179
        %s181 = sand.u32 %s44, 1
        %s182 = smul.addr %s181, 2
        %s183 = scalar_lea.vmem [#allocation2], %s182
        // Predicated region
        $region29: #{tpu_custom_call.1} parent=27 // pred_check
          %p184 = pneg %p57
        $region30: #{tpu_custom_call.1} parent=27 // pred_check_branch
          %186 = sbr.rel (%p184) target = $region32
        $region31: #{tpu_custom_call.1} parent=27 // pred_region
          %188 = dma.done %s180, 32
        $region32: #{tpu_custom_call.1} parent=27 // pred_fallthru
          _
        %s189 = sand.u32 %s72, 1
        %s190 = scalar_lea.sflag [#allocation6], %s189
        %s191 = sand.u32 %s72, 1
        %s192 = smul.addr %s191, 8
        %s193 = scalar_lea.vmem [#allocation5], %s192
        // Predicated region
        $region33: #{tpu_custom_call.1} parent=27 // pred_check
          %p194 = pneg %p85
        $region34: #{tpu_custom_call.1} parent=27 // pred_check_branch
          %196 = sbr.rel (%p194) target = $region36
        $region35: #{tpu_custom_call.1} parent=27 // pred_region
          %198 = dma.done %s190, 128
        $region36: #{tpu_custom_call.1} parent=27 // pred_fallthru
          _
        %s199 = sand.u32 %s44, 1
        %s200 = scalar_lea.sflag [#allocation3], %s199
        %s201 = sand.u32 %s44, 1
        %s202 = smul.addr %s201, 2
        %s203 = scalar_lea.vmem [#allocation2], %s202
        %p204 = pneg %p57
        %p205 = pneg %p54
        %s206 = sand.u32 %s72, 1
        %s207 = scalar_lea.sflag [#allocation6], %s206
        %s208 = sand.u32 %s72, 1
        %s209 = smul.addr %s208, 8
        %s210 = scalar_lea.vmem [#allocation5], %s209
        %p211 = pneg %p85
        %p212 = pneg %p82
        %p213 = pneg %p113
        %p214 = pneg %p110
        %s215 = sand.u32 %s100, 1
        %s216 = scalar_lea.sflag [#allocation4], %s215
        %s217 = sand.u32 %s100, 1
        %s218 = smul.addr %s217, 8
        %s219 = scalar_lea.vmem [#allocation7], %s218
        %v220 = vld [vmem:[%s193] sm:$0xff]
        %vm221 = vcmask 261120
        %v222 = vsel %vm221, %v220, 0.0
        %v223 = vrot.slane %v222, 4
        %v224 = vadd.f32 %v222, %v223
        %v225 = vrot.slane %v224, 2
        %v226 = vadd.f32 %v224, %v225
        %v227 = vrot.slane %v226, 1
        %v228 = vadd.f32 %v226, %v227
        %v229 = vmul.f32 %v228, 0.125
        %v230 = vsub.f32 %v220, %v229
        %v231 = vmul.f32 %v230, %v230
        %v232 = vsel %vm221, %v231, 0.0
        %v233 = vrot.slane %v232, 4
        %v234 = vadd.f32 %v232, %v233
        %v235 = vrot.slane %v234, 2
        %v236 = vadd.f32 %v234, %v235
        %v237 = vrot.slane %v236, 1
        %v238 = vadd.f32 %v236, %v237
        %v239 = vmul.f32 %v238, 0.125
        %v240 = vld [vmem:[%s183] sm:$0x3]
        %v241 = vadd.f32 %v239, 1e-05
        %v242 = vrsqrt.pop %v241
        %v243 = vmul.f32 %v242, %v241
        %v244 = vmul.f32 %v243, %v242
        %v245 = vmul.f32 0.5, %v244
        %v246 = vsub.f32 1.5, %v245
        %v247 = vmul.f32 %v242, %v246
        %vm248 = vweird.f32 %v241
        %vm249 = vweird.f32 %v242
        %vm250 = vmor %vm248, %vm249
        %v251 = vsel %vm250, %v242, %v247
        %v252 = vadd.f32 %v240, 1.0
        %v253 = vmul.f32 %v251, %v252
        %v254 = vmul.f32 %v229, %v253
        %v256 = vrot.slane %v254, 7
        %v258 = vsub.f32 %v240, %v256
        %v259 = vperm.slane %v253, 0
        %v260 = vmul.f32 %v220, %v259
        %v261 = vperm.slane %v258, 1
        %v262 = vadd.f32 %v260, %v261
        %263 = vst.msk [vmem:[%s219] sm:$0xff] %vm221, %v262
        %s264 = sand.u32 %s100, 1
        %s265 = scalar_lea.sflag [#allocation4], %s264
        %s266 = sand.u32 %s100, 1
        %s267 = smul.addr %s266, 8
        %s268 = scalar_lea.vmem [#allocation7], %s267
        // Predicated region
        $region37: #{tpu_custom_call.1} parent=27 // pred_check
          %p269 = pneg %p110
        $region38: #{tpu_custom_call.1} parent=27 // pred_check_branch
          %271 = sbr.rel (%p269) target = $region40
        $region39: #{tpu_custom_call.1} parent=27 // pred_region
          %273 = vsyncadd %s265, 0
          %s274 = sadd.s32 %s27, %s26
          %s275 = smul.addr %s274, 8
          %s276 = scalar_lea.hbm %s2, %s275
          %s278 = sshll.u32 %s268, 4
          %s279 = int_to_ptr.vmem [resolvable:$true] %s278
          %s280 = sshll.u32 %s276, 4
          %s281 = int_to_ptr.hbm [resolvable:$true] %s280
          %283 = dma.vmem_to_hbm [thread:$0]  %s279, 128, %s281, %s265
        $region40: #{tpu_custom_call.1} parent=27 // pred_fallthru
          _
      $region28: #{tpu_custom_call.1} parent=5 // pred_fallthru
        _
      %p284 = scmp.le.s32.totalorder 2, %s17
      // Predicated region
      $region41: #{tpu_custom_call.1} parent=5 // pred_check
        %p285 = pneg %p284
      $region42: #{tpu_custom_call.1} parent=5 // pred_check_branch
        %287 = sbr.rel (%p285) target = $region44
      $region43: #{tpu_custom_call.1} parent=5 // pred_region
        %s288 = ssub.s32 %s17, 2
        // Predicated region
        $region45: #{tpu_custom_call.1} parent=43 // pred_check
          %p289 = pneg %p116
        $region46: #{tpu_custom_call.1} parent=43 // pred_check_branch
          %291 = sbr.rel (%p289) target = $region48
        $region47: #{tpu_custom_call.1} parent=43 // pred_region
          %s292 = sand.u32 %s101, 1
          %s293 = scalar_lea.sflag [#allocation4], %s292
          %s294 = sand.u32 %s101, 1
          %s295 = smul.addr %s294, 8
          %s296 = scalar_lea.vmem [#allocation7], %s295
          %298 = dma.done %s293, 128
        $region48: #{tpu_custom_call.1} parent=43 // pred_fallthru
          _
      $region44: #{tpu_custom_call.1} parent=5 // pred_fallthru
        _
    $region6: #{tpu_custom_call.1} parent=1 // loop_footer
      %s21 = sadd.s32 1, %s17
    $region7: #{tpu_custom_call.1} parent=1 // loop_footer_branch
      %16 = sbr.rel target = $region3
    $region8: #{tpu_custom_call.1} parent=1 // loop_exit
      _
    %299 = vsyncpa [#allocation3], 1
    %s300 = scalar_lea.sflag [#allocation3], 1
    %301 = vsyncpa %s300, 1
    %302 = vsyncpa [#allocation6], 1
    %s303 = scalar_lea.sflag [#allocation6], 1
    %304 = vsyncpa %s303, 1
    %305 = vsyncpa [#allocation4], 1
    %s306 = scalar_lea.sflag [#allocation4], 1
    %307 = vsyncpa %s306, 1

</llo_original>
